<compile_context>
chip_gen: v5e
topology: v5e:2x2
jax: 0.10.0
libtpu: 0.0.40
codegen_flags: <defaults>
</compile_context>

<pallas_src>
import jax
import jax.numpy as jnp
from jax.experimental import pallas as pl
from jax.experimental.pallas import tpu as pltpu


def _round_up(x, m):
    return (x + m - 1) // m * m


def _chip_vmem_bytes():
    """Physical VMEM per TensorCore; conservative (v7x-like) fallback."""
    try:
        info = pltpu.get_tpu_info()
        for attr in ("vmem_capacity_bytes", "vmem_bytes", "vmem_size_bytes"):
            v = getattr(info, attr, None)
            if v:
                return int(v)
    except Exception:
        pass
    return 64 * 1024 * 1024


# ---------------------------------------------------------------------------
# Stage 1: support = x @ W       grid = (b, node tile i, H tile h, F tile k)
# ---------------------------------------------------------------------------
def support_kernel(x_ref, w_ref, o_ref, acc_ref):
    k = pl.program_id(3)

    @pl.when(k == 0)
    def _():
        acc_ref[...] = jnp.zeros_like(acc_ref)

    acc_ref[...] += jnp.dot(x_ref[...], w_ref[...],
                            preferred_element_type=jnp.float32)

    @pl.when(k == pl.num_programs(3) - 1)
    def _():
        o_ref[...] = acc_ref[...].astype(o_ref.dtype)


# ---------------------------------------------------------------------------
# Stage 2: out = adj @ support + bias
#          grid = (b, out-row tile i, H tile h, reduction node tile j)
# ---------------------------------------------------------------------------
def aggregate_kernel(adj_ref, s_ref, b_ref, o_ref, acc_ref):
    j = pl.program_id(3)

    @pl.when(j == 0)
    def _():
        acc_ref[...] = jnp.zeros_like(acc_ref)

    acc_ref[...] += jnp.dot(adj_ref[...], s_ref[...],
                            preferred_element_type=jnp.float32)

    @pl.when(j == pl.num_programs(3) - 1)
    def _():
        o_ref[...] = (acc_ref[...] + b_ref[...]).astype(o_ref.dtype)


# ---------------------------------------------------------------------------
# One-time parameter preparation (padding / casting / tiling decisions).
# ---------------------------------------------------------------------------
def prepare_gcn(weight, adj, bias=None, batch_hint=1):
    """weight: (F, H), adj: (N, N) static buffer, bias: (H,) or None."""
    F, H = weight.shape
    N = adj.shape[0]

    vmem = _chip_vmem_bytes()
    big_vmem = vmem >= 96 * 1024 * 1024          # v5e / v6e: 128 MiB physical
    max_tile_n = 512 if big_vmem else 256        # v7x: 64 MiB, 256-wide MXU
    vmem_cap = (96 if big_vmem else 48) * 1024 * 1024

    # Lane-dense padding: every matmul dim padded to a multiple of 128.
    F_pad = _round_up(F, 128)
    H_pad = _round_up(H, 128)

    if N <= max_tile_n:
        tile_n = _round_up(N, 128)
        n_pad = tile_n
    else:
        tile_n = max_tile_n
        n_pad = _round_up(N, tile_n)
    n_tiles = n_pad // tile_n

    # Tile F (the K dim of x @ W) so W blocks stay bounded for wide layers.
    tile_f = min(F_pad, 512)
    F_pad = _round_up(F_pad, tile_f)
    f_tiles = F_pad // tile_f

    # Tile H; guarantee >= 2 parallel grid units on 2-TensorCore chips (v7x)
    # when the batch x node-tile extent would otherwise be 1.
    tile_h = min(H_pad, 512)
    if (not big_vmem) and batch_hint * n_tiles == 1 and H_pad >= 256:
        tile_h = 128
    H_pad = _round_up(H_pad, tile_h)
    h_tiles = H_pad // tile_h

    f32, bf16 = jnp.float32, jnp.bfloat16
    wp = jnp.pad(weight.astype(f32),
                 ((0, F_pad - F), (0, H_pad - H))).astype(bf16)
    adjp = jnp.pad(adj.astype(f32),
                   ((0, n_pad - N), (0, n_pad - N))).astype(bf16)
    if bias is None:
        bp = jnp.zeros((1, H_pad), f32)
    else:
        bp = jnp.pad(bias.astype(f32).reshape(1, H), ((0, 0), (0, H_pad - H)))

    cfg = dict(N=N, F=F, H=H, F_pad=F_pad, H_pad=H_pad, n_pad=n_pad,
               tile_n=tile_n, tile_f=tile_f, tile_h=tile_h,
               n_tiles=n_tiles, f_tiles=f_tiles, h_tiles=h_tiles,
               vmem_cap=vmem_cap)
    return dict(weight=wp, adj=adjp, bias=bp, cfg=cfg)


# ---------------------------------------------------------------------------
# Forward builder: closes over the prepared (padded) params; jitted over x.
# ---------------------------------------------------------------------------
def make_gcn_forward(params):
    cfg = params["cfg"]
    wp, adjp, bp = params["weight"], params["adj"], params["bias"]
    (N, F, H) = (cfg["N"], cfg["F"], cfg["H"])
    (F_pad, H_pad, n_pad) = (cfg["F_pad"], cfg["H_pad"], cfg["n_pad"])
    (tile_n, tile_f, tile_h) = (cfg["tile_n"], cfg["tile_f"], cfg["tile_h"])
    (n_tiles, f_tiles, h_tiles) = (cfg["n_tiles"], cfg["f_tiles"], cfg["h_tiles"])
    vmem_cap = cfg["vmem_cap"]

    acc_bytes = 4 * tile_n * tile_h

    @jax.jit
    def forward(x):
        B = x.shape[0]
        xp = jnp.pad(x.astype(jnp.float32),
                     ((0, 0), (0, n_pad - N), (0, F_pad - F))).astype(jnp.bfloat16)

        # -------- Stage 1: support = x @ W --------
        blk1 = 2 * (tile_n * tile_f + tile_f * tile_h + tile_n * tile_h)
        vmem1 = int(min(vmem_cap,
                        max(2 * blk1 + acc_bytes + (4 << 20), 16 << 20)))
        cost1 = pl.CostEstimate(
            flops=2 * B * n_pad * F_pad * H_pad,
            transcendentals=0,
            bytes_accessed=(2 * B * n_pad * F_pad * h_tiles
                            + 2 * F_pad * H_pad * B * n_tiles
                            + 2 * B * n_pad * H_pad))
        support = pl.pallas_call(
            support_kernel,
            out_shape=jax.ShapeDtypeStruct((B, n_pad, H_pad), jnp.bfloat16),
            grid_spec=pltpu.PrefetchScalarGridSpec(
                num_scalar_prefetch=0,
                grid=(B, n_tiles, h_tiles, f_tiles),
                in_specs=[
                    pl.BlockSpec((None, tile_n, tile_f),
                                 lambda b, i, h, k: (b, i, k)),
                    pl.BlockSpec((tile_f, tile_h),
                                 lambda b, i, h, k: (k, h)),
                ],
                out_specs=pl.BlockSpec((None, tile_n, tile_h),
                                       lambda b, i, h, k: (b, i, h)),
                scratch_shapes=[pltpu.VMEM((tile_n, tile_h), jnp.float32)],
            ),
            compiler_params=pltpu.CompilerParams(
                dimension_semantics=("parallel", "parallel", "parallel",
                                     "arbitrary"),
                vmem_limit_bytes=vmem1),
            cost_estimate=cost1,
        )(xp, wp)

        # -------- Stage 2: out = adj @ support + bias --------
        blk2 = (2 * tile_n * tile_n + 2 * tile_n * tile_h
                + 4 * tile_h + 4 * tile_n * tile_h)
        vmem2 = int(min(vmem_cap,
                        max(2 * blk2 + acc_bytes + (4 << 20), 16 << 20)))
        cost2 = pl.CostEstimate(
            flops=2 * B * n_pad * n_pad * H_pad,
            transcendentals=0,
            bytes_accessed=(2 * n_pad * n_pad * B * h_tiles
                            + 2 * B * n_pad * H_pad * n_tiles
                            + 4 * H_pad
                            + 4 * B * n_pad * H_pad))
        out = pl.pallas_call(
            aggregate_kernel,
            out_shape=jax.ShapeDtypeStruct((B, n_pad, H_pad), jnp.float32),
            grid_spec=pltpu.PrefetchScalarGridSpec(
                num_scalar_prefetch=0,
                grid=(B, n_tiles, h_tiles, n_tiles),
                in_specs=[
                    pl.BlockSpec((tile_n, tile_n),
                                 lambda b, i, h, j: (i, j)),
                    pl.BlockSpec((None, tile_n, tile_h),
                                 lambda b, i, h, j: (b, j, h)),
                    pl.BlockSpec((1, tile_h),
                                 lambda b, i, h, j: (0, h)),
                ],
                out_specs=pl.BlockSpec((None, tile_n, tile_h),
                                       lambda b, i, h, j: (b, i, h)),
                scratch_shapes=[pltpu.VMEM((tile_n, tile_h), jnp.float32)],
            ),
            compiler_params=pltpu.CompilerParams(
                dimension_semantics=("parallel", "parallel", "parallel",
                                     "arbitrary"),
                vmem_limit_bytes=vmem2),
            cost_estimate=cost2,
        )(adjp, support, bp)

        return out[:, :N, :H]

    return forward


def reference_forward(x, weight, adj, bias=None):
    """Pure-JAX f32 reference matching the torch module's forward."""
    support = jnp.einsum("bnf,fh->bnh", x, weight)
    out = jnp.einsum("nm,bmh->bnh", adj, support)
    if bias is not None:
        out = out + bias
    return out


if __name__ == "__main__":
    B, N, NFEAT, NHID = 2, 8, 16, 32

    key = jax.random.PRNGKey(0)
    kw, kb, kx = jax.random.split(key, 3)

    x = jax.random.normal(kx, (B, N, NFEAT), dtype=jnp.float32)

    # Parameter init mirrors reset_parameters(): stdv = 1/sqrt(weight.size(1)).
    stdv = 1.0 / (NHID ** 0.5)
    weight = jax.random.uniform(kw, (NFEAT, NHID), jnp.float32, -stdv, stdv)
    bias = jax.random.uniform(kb, (NHID,), jnp.float32, -stdv, stdv)

    # TODO(synk): the module loads its adjacency buffer from `mat_path` (.npy);
    # no file I/O allowed here, so build a deterministic symmetric-normalized
    # ring adjacency with self-loops in-script instead.
    ring = (jnp.eye(N) + jnp.roll(jnp.eye(N), 1, axis=1)
            + jnp.roll(jnp.eye(N), -1, axis=1))
    dinv = 1.0 / jnp.sqrt(ring.sum(axis=1))
    adj = (ring * dinv[:, None] * dinv[None, :]).astype(jnp.float32)

    params = prepare_gcn(weight, adj, bias, batch_hint=B)   # pad/cast once
    gcn_forward = make_gcn_forward(params)

    out = gcn_forward(x)
    out = jax.block_until_ready(out)

    ref = reference_forward(x, weight, adj, bias)
    assert out.shape == (B, N, NHID)
    # bf16 MXU inputs with f32 accumulation -> loosened tolerance vs f32 ref.
    assert jnp.allclose(out, ref, atol=2e-2, rtol=2e-2), "mismatch vs reference"

    print("KERNEL_OK")
</pallas_src>

<mosaic_0001>
module attributes {stable_mosaic.version = 11 : i64} {
  func.func @support_kernel(%arg0: i32, %arg1: i32, %arg2: i32, %arg3: i32, %arg4: memref<1x128x128xbf16, #tpu.memory_space<vmem>>, %arg5: memref<128x128xbf16, #tpu.memory_space<vmem>>, %arg6: memref<1x128x128xbf16, #tpu.memory_space<vmem>>, %arg7: memref<128x128xf32, #tpu.memory_space<vmem>>) attributes {dimension_semantics = [#tpu.dimension_semantics<parallel>, #tpu.dimension_semantics<parallel>, #tpu.dimension_semantics<parallel>, #tpu.dimension_semantics<arbitrary>], iteration_bounds = array<i64: 2, 1, 1, 1>, scalar_prefetch = 0 : i64, scratch_operands = 1 : i64, tpu.core_type = #tpu.core_type<tc>, window_params = [{transform_indices = @transform_0, window_bounds = array<i64: 1, 128, 128>}, {transform_indices = @transform_1, window_bounds = array<i64: 128, 128>}, {transform_indices = @transform_2, window_bounds = array<i64: 1, 128, 128>}]} {
    %c0_i32 = arith.constant 0 : i32
    %0 = arith.cmpi eq, %arg3, %c0_i32 : i32
    %1 = arith.extui %0 : i1 to i32
    %c0_i32_0 = arith.constant 0 : i32
    %2 = arith.cmpi ne, %1, %c0_i32_0 : i32
    scf.if %2 {
      %cst_11 = arith.constant 0.000000e+00 : f32
      %13 = vector.broadcast %cst_11 : f32 to vector<128x128xf32>
      %c0_12 = arith.constant 0 : index
      %c0_13 = arith.constant 0 : index
      %14 = vector.load %arg7[%c0_12, %c0_13] : memref<128x128xf32, #tpu.memory_space<vmem>>, vector<128x128xf32>
      tpu.vector_store %arg7[%c0_12, %c0_13], %13 {strides = array<i32>} : memref<128x128xf32, #tpu.memory_space<vmem>>, vector<128x128xf32>,
    } else {
    }
    %c0 = arith.constant 0 : index
    %c0_1 = arith.constant 0 : index
    %3 = vector.load %arg7[%c0, %c0_1] : memref<128x128xf32, #tpu.memory_space<vmem>>, vector<128x128xf32>
    %c0_2 = arith.constant 0 : index
    %c0_3 = arith.constant 0 : index
    %c0_4 = arith.constant 0 : index
    %4 = vector.load %arg4[%c0_2, %c0_3, %c0_4] : memref<1x128x128xbf16, #tpu.memory_space<vmem>>, vector<1x128x128xbf16>
    %5 = vector.shape_cast %4 : vector<1x128x128xbf16> to vector<128x128xbf16>
    %c0_5 = arith.constant 0 : index
    %c0_6 = arith.constant 0 : index
    %6 = vector.load %arg5[%c0_5, %c0_6] : memref<128x128xbf16, #tpu.memory_space<vmem>>, vector<128x128xbf16>
    %cst = arith.constant dense<0.000000e+00> : vector<128x128xf32>
    %7 = tpu.matmul %5, %6, %cst {dimension_numbers = #tpu.dot_dimension_numbers<[1], [0], [0], [1], [0, 0, 1, 1], [], []>} : vector<128x128xbf16>, vector<128x128xbf16>, vector<128x128xf32> -> vector<128x128xf32>
    %8 = arith.addf %3, %7 : vector<128x128xf32>
    %c0_7 = arith.constant 0 : index
    %c0_8 = arith.constant 0 : index
    %9 = vector.load %arg7[%c0_7, %c0_8] : memref<128x128xf32, #tpu.memory_space<vmem>>, vector<128x128xf32>
    tpu.vector_store %arg7[%c0_7, %c0_8], %8 {strides = array<i32>} : memref<128x128xf32, #tpu.memory_space<vmem>>, vector<128x128xf32>,
    %c0_i32_9 = arith.constant 0 : i32
    %10 = arith.cmpi eq, %arg3, %c0_i32_9 : i32
    %11 = arith.extui %10 : i1 to i32
    %c0_i32_10 = arith.constant 0 : i32
    %12 = arith.cmpi ne, %11, %c0_i32_10 : i32
    scf.if %12 {
      %c0_11 = arith.constant 0 : index
      %c0_12 = arith.constant 0 : index
      %13 = vector.load %arg7[%c0_11, %c0_12] : memref<128x128xf32, #tpu.memory_space<vmem>>, vector<128x128xf32>
      %14 = arith.truncf %13 : vector<128x128xf32> to vector<128x128xbf16>
      %c0_13 = arith.constant 0 : index
      %c0_14 = arith.constant 0 : index
      %c0_15 = arith.constant 0 : index
      %15 = vector.load %arg6[%c0_13, %c0_14, %c0_15] : memref<1x128x128xbf16, #tpu.memory_space<vmem>>, vector<1x128x128xbf16>
      %16 = vector.shape_cast %15 : vector<1x128x128xbf16> to vector<128x128xbf16>
      %17 = vector.shape_cast %14 : vector<128x128xbf16> to vector<1x128x128xbf16>
      tpu.vector_store %arg6[%c0_13, %c0_14, %c0_15], %17 {strides = array<i32>} : memref<1x128x128xbf16, #tpu.memory_space<vmem>>, vector<1x128x128xbf16>,
    } else {
    }
    return
  }
  func.func @transform_0(%arg0: i32, %arg1: i32, %arg2: i32, %arg3: i32) -> (i32, i32, i32) {
    %c0_i32 = arith.constant 0 : i32
    return %arg0, %arg1, %arg3 : i32, i32, i32
  }
  func.func @transform_1(%arg0: i32, %arg1: i32, %arg2: i32, %arg3: i32) -> (i32, i32) {
    %c0_i32 = arith.constant 0 : i32
    return %arg3, %arg2 : i32, i32
  }
  func.func @transform_2(%arg0: i32, %arg1: i32, %arg2: i32, %arg3: i32) -> (i32, i32, i32) {
    %c0_i32 = arith.constant 0 : i32
    return %arg0, %arg1, %arg2 : i32, i32, i32
  }
}

module attributes {stable_mosaic.version = 11 : i64} {
  func.func @aggregate_kernel(%arg0: i32, %arg1: i32, %arg2: i32, %arg3: i32, %arg4: memref<128x128xbf16, #tpu.memory_space<vmem>>, %arg5: memref<1x128x128xbf16, #tpu.memory_space<vmem>>, %arg6: memref<1x128xf32, #tpu.memory_space<vmem>>, %arg7: memref<1x128x128xf32, #tpu.memory_space<vmem>>, %arg8: memref<128x128xf32, #tpu.memory_space<vmem>>) attributes {dimension_semantics = [#tpu.dimension_semantics<parallel>, #tpu.dimension_semantics<parallel>, #tpu.dimension_semantics<parallel>, #tpu.dimension_semantics<arbitrary>], iteration_bounds = array<i64: 2, 1, 1, 1>, scalar_prefetch = 0 : i64, scratch_operands = 1 : i64, tpu.core_type = #tpu.core_type<tc>, window_params = [{transform_indices = @transform_0, window_bounds = array<i64: 128, 128>}, {transform_indices = @transform_1, window_bounds = array<i64: 1, 128, 128>}, {transform_indices = @transform_2, window_bounds = array<i64: 1, 128>}, {transform_indices = @transform_3, window_bounds = array<i64: 1, 128, 128>}]} {
    %c0_i32 = arith.constant 0 : i32
    %0 = arith.cmpi eq, %arg3, %c0_i32 : i32
    %1 = arith.extui %0 : i1 to i32
    %c0_i32_0 = arith.constant 0 : i32
    %2 = arith.cmpi ne, %1, %c0_i32_0 : i32
    scf.if %2 {
      %cst_11 = arith.constant 0.000000e+00 : f32
      %13 = vector.broadcast %cst_11 : f32 to vector<128x128xf32>
      %c0_12 = arith.constant 0 : index
      %c0_13 = arith.constant 0 : index
      %14 = vector.load %arg8[%c0_12, %c0_13] : memref<128x128xf32, #tpu.memory_space<vmem>>, vector<128x128xf32>
      tpu.vector_store %arg8[%c0_12, %c0_13], %13 {strides = array<i32>} : memref<128x128xf32, #tpu.memory_space<vmem>>, vector<128x128xf32>,
    } else {
    }
    %c0 = arith.constant 0 : index
    %c0_1 = arith.constant 0 : index
    %3 = vector.load %arg8[%c0, %c0_1] : memref<128x128xf32, #tpu.memory_space<vmem>>, vector<128x128xf32>
    %c0_2 = arith.constant 0 : index
    %c0_3 = arith.constant 0 : index
    %4 = vector.load %arg4[%c0_2, %c0_3] : memref<128x128xbf16, #tpu.memory_space<vmem>>, vector<128x128xbf16>
    %c0_4 = arith.constant 0 : index
    %c0_5 = arith.constant 0 : index
    %c0_6 = arith.constant 0 : index
    %5 = vector.load %arg5[%c0_4, %c0_5, %c0_6] : memref<1x128x128xbf16, #tpu.memory_space<vmem>>, vector<1x128x128xbf16>
    %6 = vector.shape_cast %5 : vector<1x128x128xbf16> to vector<128x128xbf16>
    %cst = arith.constant dense<0.000000e+00> : vector<128x128xf32>
    %7 = tpu.matmul %4, %6, %cst {dimension_numbers = #tpu.dot_dimension_numbers<[1], [0], [0], [1], [0, 0, 1, 1], [], []>} : vector<128x128xbf16>, vector<128x128xbf16>, vector<128x128xf32> -> vector<128x128xf32>
    %8 = arith.addf %3, %7 : vector<128x128xf32>
    %c0_7 = arith.constant 0 : index
    %c0_8 = arith.constant 0 : index
    %9 = vector.load %arg8[%c0_7, %c0_8] : memref<128x128xf32, #tpu.memory_space<vmem>>, vector<128x128xf32>
    tpu.vector_store %arg8[%c0_7, %c0_8], %8 {strides = array<i32>} : memref<128x128xf32, #tpu.memory_space<vmem>>, vector<128x128xf32>,
    %c0_i32_9 = arith.constant 0 : i32
    %10 = arith.cmpi eq, %arg3, %c0_i32_9 : i32
    %11 = arith.extui %10 : i1 to i32
    %c0_i32_10 = arith.constant 0 : i32
    %12 = arith.cmpi ne, %11, %c0_i32_10 : i32
    scf.if %12 {
      %c0_11 = arith.constant 0 : index
      %c0_12 = arith.constant 0 : index
      %13 = vector.load %arg8[%c0_11, %c0_12] : memref<128x128xf32, #tpu.memory_space<vmem>>, vector<128x128xf32>
      %c0_13 = arith.constant 0 : index
      %c0_14 = arith.constant 0 : index
      %14 = vector.load %arg6[%c0_13, %c0_14] : memref<1x128xf32, #tpu.memory_space<vmem>>, vector<1x128xf32>
      %15 = vector.broadcast %14 : vector<1x128xf32> to vector<128x128xf32>
      %16 = arith.addf %13, %15 : vector<128x128xf32>
      %c0_15 = arith.constant 0 : index
      %c0_16 = arith.constant 0 : index
      %c0_17 = arith.constant 0 : index
      %17 = vector.load %arg7[%c0_15, %c0_16, %c0_17] : memref<1x128x128xf32, #tpu.memory_space<vmem>>, vector<1x128x128xf32>
      %18 = vector.shape_cast %17 : vector<1x128x128xf32> to vector<128x128xf32>
      %19 = vector.shape_cast %16 : vector<128x128xf32> to vector<1x128x128xf32>
      tpu.vector_store %arg7[%c0_15, %c0_16, %c0_17], %19 {strides = array<i32>} : memref<1x128x128xf32, #tpu.memory_space<vmem>>, vector<1x128x128xf32>,
    } else {
    }
    return
  }
  func.func @transform_0(%arg0: i32, %arg1: i32, %arg2: i32, %arg3: i32) -> (i32, i32) {
    %c0_i32 = arith.constant 0 : i32
    return %arg1, %arg3 : i32, i32
  }
  func.func @transform_1(%arg0: i32, %arg1: i32, %arg2: i32, %arg3: i32) -> (i32, i32, i32) {
    %c0_i32 = arith.constant 0 : i32
    return %arg0, %arg3, %arg2 : i32, i32, i32
  }
  func.func @transform_2(%arg0: i32, %arg1: i32, %arg2: i32, %arg3: i32) -> (i32, i32) {
    %c0_i32 = arith.constant 0 : i32
    %c0_i32_0 = arith.constant 0 : i32
    return %c0_i32, %arg2 : i32, i32
  }
  func.func @transform_3(%arg0: i32, %arg1: i32, %arg2: i32, %arg3: i32) -> (i32, i32, i32) {
    %c0_i32 = arith.constant 0 : i32
    return %arg0, %arg1, %arg2 : i32, i32, i32
  }
}

</mosaic_0001>

<llo_original>
// kernel: forward.3
$region0: #{forward.3}
  #allocation0 [shape = 'u32[]', space=smem, size = 0x4, offset = 0x4, fixed_abs, tag = 'smem constant byte address 0x4 - core index']
  #allocation1 [shape = 'u32[72,128]{1,0:T(1,128)}', space=vmem, size = 0x9000, scoped, tag = 'internal scratch']
  #allocation2 [shape = 'f32[128,128]{1,0:T(8,128)}', space=vmem, size = 0x10000, scoped, tag = 'scratch operand']
  %s0 = inlined_call_operand.vmem [shape: bf16[128,128], index: 0, kind: input, shape index: {}]
  %s1 = inlined_call_operand.vmem [shape: bf16[2,128,128], index: 1, kind: input, shape index: {}]
  %s2 = inlined_call_operand.vmem [shape: f32[1,128], index: 2, kind: input, shape index: {}]
  %s3 = inlined_call_operand.vmem [shape: f32[2,128,128], index: 3, kind: output, shape index: {}]
  %s4 = sld [smem:[#allocation0]]
  $region53: #{forward.3} parent=0
    _
  %s6 = ssub.s32 1, %s4
  %s7 = scalar_select 0, %s6, %s4
  loop: start=0, step=1, limit=4
  $region2: #{forward.3} parent=0 // loop_pre_header
    _
  $region3: #{forward.3} parent=0 // loop_header
    %s9 = sphi 0, %s13
    %p10 = scmp.ge.s32.totalorder %s9, 4
    %s16 = sphi 0, %s42
    %s17 = sphi 0, %s38
    %s18 = sphi 0, %s34
    %s19 = sphi 0, %s30
    %s20 = sphi 0, %s16
    %s21 = sphi 0, %s17
    %s22 = sphi 0, %s18
    %s23 = sphi 0, %s19
    %s24 = sphi 0, %s20
    %s25 = sphi 0, %s21
    %s26 = sphi 0, %s22
    %s27 = sphi 0, %s23
    %s47 = sphi 0, %s49
    %s50 = sphi 0, %s47
    %s51 = sphi 0, %s50
    %s67 = sphi 0, %s51
    %s77 = sphi 0, %s79
    %s80 = sphi 0, %s77
    %s81 = sphi 0, %s80
    %s97 = sphi 0, %s81
    %s103 = sphi 0, %s105
    %s106 = sphi 0, %s103
    %s107 = sphi 0, %s106
    %s123 = sphi 0, %s107
    %s133 = sphi 0, %s135
    %s136 = sphi 0, %s133
    %s137 = sphi 0, %s136
    %s153 = sphi 0, %s137
  $region4: #{forward.3} parent=0 // loop_header_branch
    %12 = sbr.rel (%p10) target = $region8
  $region5: #{forward.3} parent=0 // loop_body
    %s14 = ssub.s32 %s9, 1
    %s15 = ssub.s32 %s9, 2
    %s28 = sadd.s32 1, %s19
    %p29 = scmp.ge.s32.totalorder %s28, 1
    %s30 = scalar_select %p29, 0, %s28
    %s31 = sadd.s32 1, %s18
    %s32 = scalar_select %p29, %s31, %s18
    %p33 = scmp.ge.s32.totalorder %s32, 1
    %s34 = scalar_select %p33, 0, %s32
    %s35 = sadd.s32 1, %s17
    %s36 = scalar_select %p33, %s35, %s17
    %p37 = scmp.ge.s32.totalorder %s36, 1
    %s38 = scalar_select %p37, 0, %s36
    %s39 = sadd.s32 1, %s16
    %s40 = scalar_select %p37, %s39, %s16
    %p41 = scmp.ge.s32.totalorder %s40, 2
    %s42 = scalar_select %p41, 0, %s40
    %s43 = ssub.s32 %s17, %s38
    %s44 = ssub.s32 %s19, %s30
    %s45 = sor.u32 %s43, %s44
    %p46 = scmp.eq.s32.totalorder %s45, 0
    %s48 = sadd.s32 %s47, 1
    %s49 = scalar_select %p46, %s47, %s48
    %p52 = pneg %p46
    %p53 = scmp.eq.s32.totalorder %s9, 1
    %p54 = por %p52, %p53
    %p55 = scmp.ne.s32.totalorder %s47, %s50
    %p56 = scmp.eq.s32.totalorder %s9, 0
    %p57 = por %p55, %p56
    %p58 = scmp.ne.s32.totalorder %s47, %s50
    %p59 = scmp.eq.s32.totalorder %s14, 1
    %p60 = por %p58, %p59
    %p61 = scmp.ne.s32.totalorder %s50, %s51
    %p62 = scmp.eq.s32.totalorder %s14, 0
    %p63 = por %p61, %p62
    %p64 = scmp.ne.s32.totalorder %s50, %s51
    %p65 = scmp.eq.s32.totalorder %s15, 1
    %p66 = por %p64, %p65
    %p68 = scmp.ne.s32.totalorder %s51, %s67
    %p69 = scmp.eq.s32.totalorder %s15, 0
    %p70 = por %p68, %p69
    %s71 = ssub.s32 %s16, %s42
    %s72 = ssub.s32 %s19, %s30
    %s73 = sor.u32 %s71, %s72
    %s74 = ssub.s32 %s18, %s34
    %s75 = sor.u32 %s73, %s74
    %p76 = scmp.eq.s32.totalorder %s75, 0
    %s78 = sadd.s32 %s77, 1
    %s79 = scalar_select %p76, %s77, %s78
    %p82 = pneg %p76
    %p83 = scmp.eq.s32.totalorder %s9, 1
    %p84 = por %p82, %p83
    %p85 = scmp.ne.s32.totalorder %s77, %s80
    %p86 = scmp.eq.s32.totalorder %s9, 0
    %p87 = por %p85, %p86
    %p88 = scmp.ne.s32.totalorder %s77, %s80
    %p89 = scmp.eq.s32.totalorder %s14, 1
    %p90 = por %p88, %p89
    %p91 = scmp.ne.s32.totalorder %s80, %s81
    %p92 = scmp.eq.s32.totalorder %s14, 0
    %p93 = por %p91, %p92
    %p94 = scmp.ne.s32.totalorder %s80, %s81
    %p95 = scmp.eq.s32.totalorder %s15, 1
    %p96 = por %p94, %p95
    %p98 = scmp.ne.s32.totalorder %s81, %s97
    %p99 = scmp.eq.s32.totalorder %s15, 0
    %p100 = por %p98, %p99
    %s101 = ssub.s32 %s18, %s34
    %p102 = scmp.eq.s32.totalorder %s101, 0
    %s104 = sadd.s32 %s103, 1
    %s105 = scalar_select %p102, %s103, %s104
    %p108 = pneg %p102
    %p109 = scmp.eq.s32.totalorder %s9, 1
    %p110 = por %p108, %p109
    %p111 = scmp.ne.s32.totalorder %s103, %s106
    %p112 = scmp.eq.s32.totalorder %s9, 0
    %p113 = por %p111, %p112
    %p114 = scmp.ne.s32.totalorder %s103, %s106
    %p115 = scmp.eq.s32.totalorder %s14, 1
    %p116 = por %p114, %p115
    %p117 = scmp.ne.s32.totalorder %s106, %s107
    %p118 = scmp.eq.s32.totalorder %s14, 0
    %p119 = por %p117, %p118
    %p120 = scmp.ne.s32.totalorder %s106, %s107
    %p121 = scmp.eq.s32.totalorder %s15, 1
    %p122 = por %p120, %p121
    %p124 = scmp.ne.s32.totalorder %s107, %s123
    %p125 = scmp.eq.s32.totalorder %s15, 0
    %p126 = por %p124, %p125
    %s127 = ssub.s32 %s16, %s42
    %s128 = ssub.s32 %s17, %s38
    %s129 = sor.u32 %s127, %s128
    %s130 = ssub.s32 %s18, %s34
    %s131 = sor.u32 %s129, %s130
    %p132 = scmp.eq.s32.totalorder %s131, 0
    %s134 = sadd.s32 %s133, 1
    %s135 = scalar_select %p132, %s133, %s134
    %p138 = pneg %p132
    %p139 = scmp.eq.s32.totalorder %s9, 1
    %p140 = por %p138, %p139
    %p141 = scmp.ne.s32.totalorder %s133, %s136
    %p142 = scmp.eq.s32.totalorder %s9, 0
    %p143 = por %p141, %p142
    %p144 = scmp.ne.s32.totalorder %s133, %s136
    %p145 = scmp.eq.s32.totalorder %s14, 1
    %p146 = por %p144, %p145
    %p147 = scmp.ne.s32.totalorder %s136, %s137
    %p148 = scmp.eq.s32.totalorder %s14, 0
    %p149 = por %p147, %p148
    %p150 = scmp.ne.s32.totalorder %s136, %s137
    %p151 = scmp.eq.s32.totalorder %s15, 1
    %p152 = por %p150, %p151
    %p154 = scmp.ne.s32.totalorder %s137, %s153
    %p155 = scmp.eq.s32.totalorder %s15, 0
    %p156 = por %p154, %p155
    %p157 = scmp.le.s32.totalorder 1, %s9
    %p158 = scmp.lt.s32.totalorder %s9, 3
    %p159 = pnand %p157, %p158
    %p160 = pneg %p159
    // Predicated region
    $region9: #{forward.3} parent=5 // pred_check
      _
    $region10: #{forward.3} parent=5 // pred_check_branch
      %162 = sbr.rel (%p159) target = $region12
    $region11: #{forward.3} parent=5 // pred_region
      %s163 = ssub.s32 %s9, 1
      // Predicated region
      $region13: #{forward.3} parent=11 // pred_check
        %p164 = pneg %p63
      $region14: #{forward.3} parent=11 // pred_check_branch
        %166 = sbr.rel (%p164) target = $region16
      $region15: #{forward.3} parent=11 // pred_region
        %s167 = smul.u32 16, %s21
        %p168 = scmp.lt.s32.totalorder %s167, 15
        %s169 = scalar_select %p168, %s167, 15
        %p170 = scmp.lt.s32.totalorder %s23, 0
        %s171 = scalar_select %p170, %s23, 0
        %s172 = sadd.s32 %s171, %s169
        %s173 = smul.addr %s172, 4
        %s174 = scalar_lea.vmem %s0, %s173
        %s175 = smul.u32 16, %s21
      $region16: #{forward.3} parent=11 // pred_fallthru
        _
      // Predicated region
      $region17: #{forward.3} parent=11 // pred_check
        %p176 = pneg %p119
      $region18: #{forward.3} parent=11 // pred_check_branch
        %178 = sbr.rel (%p176) target = $region20
      $region19: #{forward.3} parent=11 // pred_region
        %p179 = scmp.lt.s32.totalorder %s22, 0
        %s180 = scalar_select %p179, %s22, 0
        %s181 = scalar_lea.vmem %s2, %s180
      $region20: #{forward.3} parent=11 // pred_fallthru
        _
    $region12: #{forward.3} parent=5 // pred_fallthru
      _
    %p182 = scmp.lt.s32.totalorder %s9, 2
    // Predicated region
    $region21: #{forward.3} parent=5 // pred_check
      %p183 = pneg %p182
    $region22: #{forward.3} parent=5 // pred_check_branch
      %185 = sbr.rel (%p183) target = $region24
    $region23: #{forward.3} parent=5 // pred_region
      // Predicated region
      $region25: #{forward.3} parent=23 // pred_check
        %p186 = pneg %p87
      $region26: #{forward.3} parent=23 // pred_check_branch
        %188 = sbr.rel (%p186) target = $region28
      $region27: #{forward.3} parent=23 // pred_region
        %s189 = smul.u32 16, %s19
        %p190 = scmp.lt.s32.totalorder %s16, 1
        %s191 = scalar_select %p190, %s16, 1
        %p192 = scmp.lt.s32.totalorder %s189, 15
        %s193 = scalar_select %p192, %s189, 15
        %p194 = scmp.lt.s32.totalorder %s18, 0
        %s195 = scalar_select %p194, %s18, 0
        %s196 = sadd.s32 %s195, %s193
        %s197 = smul.addr %s191, 16
        %s198 = sadd.s32 %s196, %s197
        %s199 = smul.addr %s198, 4
        %s200 = scalar_lea.vmem %s1, %s199
        %s201 = smul.u32 16, %s19
      $region28: #{forward.3} parent=23 // pred_fallthru
        _
    $region24: #{forward.3} parent=5 // pred_fallthru
      _
    %p202 = scmp.le.s32.totalorder 1, %s9
    %p203 = scmp.lt.s32.totalorder %s9, 3
    %p204 = pnand %p202, %p203
    %p205 = pneg %p204
    // Predicated region
    $region29: #{forward.3} parent=5 // pred_check
      _
    $region30: #{forward.3} parent=5 // pred_check_branch
      %207 = sbr.rel (%p204) target = $region32
    $region31: #{forward.3} parent=5 // pred_region
      %s208 = ssub.s32 %s9, 1
      %s209 = smul.u32 16, %s21
      %p210 = scmp.lt.s32.totalorder %s209, 15
      %s211 = scalar_select %p210, %s209, 15
      %p212 = scmp.lt.s32.totalorder %s23, 0
      %s213 = scalar_select %p212, %s23, 0
      %s214 = sadd.s32 %s213, %s211
      %s215 = smul.addr %s214, 4
      %s216 = scalar_lea.vmem %s0, %s215
      %p217 = pneg %p63
      %p218 = pneg %p60
      %s219 = smul.u32 16, %s23
      %p220 = scmp.lt.s32.totalorder %s20, 1
      %s221 = scalar_select %p220, %s20, 1
      %p222 = scmp.lt.s32.totalorder %s219, 15
      %s223 = scalar_select %p222, %s219, 15
      %p224 = scmp.lt.s32.totalorder %s22, 0
      %s225 = scalar_select %p224, %s22, 0
      %s226 = sadd.s32 %s225, %s223
      %s227 = smul.addr %s221, 16
      %s228 = sadd.s32 %s226, %s227
      %s229 = smul.addr %s228, 4
      %s230 = scalar_lea.vmem %s1, %s229
      %p231 = pneg %p93
      %p232 = pneg %p90
      %p233 = scmp.lt.s32.totalorder %s22, 0
      %s234 = scalar_select %p233, %s22, 0
      %s235 = scalar_lea.vmem %s2, %s234
      %p236 = pneg %p119
      %p237 = pneg %p116
      %p238 = pneg %p149
      %p239 = pneg %p146
      %s240 = smul.u32 16, %s21
      %p241 = scmp.lt.s32.totalorder %s20, 1
      %s242 = scalar_select %p241, %s20, 1
      %p243 = scmp.lt.s32.totalorder %s240, 15
      %s244 = scalar_select %p243, %s240, 15
      %p245 = scmp.lt.s32.totalorder %s22, 0
      %s246 = scalar_select %p245, %s22, 0
      %s247 = sadd.s32 %s246, %s244
      %s248 = smul.addr %s242, 16
      %s249 = sadd.s32 %s247, %s248
      %s250 = smul.addr %s249, 8
      %s251 = scalar_lea.vmem %s3, %s250
      %s252 = smul.u32 16, %s21
      %p253 = scmp.lt.s32.totalorder %s252, 15
      %s254 = scalar_select %p253, %s252, 15
      %p255 = scmp.lt.s32.totalorder %s23, 0
      %s256 = scalar_select %p255, %s23, 0
      %s257 = sadd.s32 %s256, %s254
      %s258 = smul.addr %s257, 4
      %s259 = scalar_lea.vmem %s0, %s258
      %s260 = smul.u32 16, %s21
      %s261 = smul.u32 16, %s23
      %p262 = scmp.lt.s32.totalorder %s20, 1
      %s263 = scalar_select %p262, %s20, 1
      %p264 = scmp.lt.s32.totalorder %s261, 15
      %s265 = scalar_select %p264, %s261, 15
      %p266 = scmp.lt.s32.totalorder %s22, 0
      %s267 = scalar_select %p266, %s22, 0
      %s268 = sadd.s32 %s267, %s265
      %s269 = smul.addr %s263, 16
      %s270 = sadd.s32 %s268, %s269
      %s271 = smul.addr %s270, 4
      %s272 = scalar_lea.vmem %s1, %s271
      %s273 = smul.u32 16, %s23
      %p274 = scmp.lt.s32.totalorder %s22, 0
      %s275 = scalar_select %p274, %s22, 0
      %s276 = scalar_lea.vmem %s2, %s275
      %s277 = smul.u32 16, %s21
      %p278 = scmp.lt.s32.totalorder %s20, 1
      %s279 = scalar_select %p278, %s20, 1
      %p280 = scmp.lt.s32.totalorder %s277, 15
      %s281 = scalar_select %p280, %s277, 15
      %p282 = scmp.lt.s32.totalorder %s22, 0
      %s283 = scalar_select %p282, %s22, 0
      %s284 = sadd.s32 %s283, %s281
      %s285 = smul.addr %s279, 16
      %s286 = sadd.s32 %s284, %s285
      %s287 = smul.addr %s286, 8
      %s288 = scalar_lea.vmem %s3, %s287
      %s289 = smul.u32 16, %s21
      %p290 = scmp.eq.s32.totalorder %s23, 0
      // Predicated region
      $region33: #{forward.3} parent=31 // pred_check
        %p291 = pneg %p290
      $region34: #{forward.3} parent=31 // pred_check_branch
        %293 = sbr.rel (%p291) target = $region36
      $region35: #{forward.3} parent=31 // pred_region
        %294 = vst [vmem:[#allocation2] sm:$0xff] 0.0
        %295 = vst [vmem:[#allocation2 + $0x8] sm:$0xff] 0.0
        %296 = vst [vmem:[#allocation2 + $0x10] sm:$0xff] 0.0
        %297 = vst [vmem:[#allocation2 + $0x18] sm:$0xff] 0.0
        %298 = vst [vmem:[#allocation2 + $0x20] sm:$0xff] 0.0
        %299 = vst [vmem:[#allocation2 + $0x28] sm:$0xff] 0.0
        %300 = vst [vmem:[#allocation2 + $0x30] sm:$0xff] 0.0
        %301 = vst [vmem:[#allocation2 + $0x38] sm:$0xff] 0.0
        %302 = vst [vmem:[#allocation2 + $0x40] sm:$0xff] 0.0
        %303 = vst [vmem:[#allocation2 + $0x48] sm:$0xff] 0.0
        %304 = vst [vmem:[#allocation2 + $0x50] sm:$0xff] 0.0
        %305 = vst [vmem:[#allocation2 + $0x58] sm:$0xff] 0.0
        %306 = vst [vmem:[#allocation2 + $0x60] sm:$0xff] 0.0
        %307 = vst [vmem:[#allocation2 + $0x68] sm:$0xff] 0.0
        %308 = vst [vmem:[#allocation2 + $0x70] sm:$0xff] 0.0
        %309 = vst [vmem:[#allocation2 + $0x78] sm:$0xff] 0.0
      $region36: #{forward.3} parent=31 // pred_fallthru
        _
      %v310 = vld [vmem:[#allocation2] sm:$0xff]
      %v311 = vld [vmem:[#allocation2 + $0x8] sm:$0xff]
      %v312 = vld [vmem:[#allocation2 + $0x10] sm:$0xff]
      %v313 = vld [vmem:[#allocation2 + $0x18] sm:$0xff]
      %v314 = vld [vmem:[#allocation2 + $0x20] sm:$0xff]
      %v315 = vld [vmem:[#allocation2 + $0x28] sm:$0xff]
      %v316 = vld [vmem:[#allocation2 + $0x30] sm:$0xff]
      %v317 = vld [vmem:[#allocation2 + $0x38] sm:$0xff]
      %v318 = vld [vmem:[#allocation2 + $0x40] sm:$0xff]
      %v319 = vld [vmem:[#allocation2 + $0x48] sm:$0xff]
      %v320 = vld [vmem:[#allocation2 + $0x50] sm:$0xff]
      %v321 = vld [vmem:[#allocation2 + $0x58] sm:$0xff]
      %v322 = vld [vmem:[#allocation2 + $0x60] sm:$0xff]
      %v323 = vld [vmem:[#allocation2 + $0x68] sm:$0xff]
      %v324 = vld [vmem:[#allocation2 + $0x70] sm:$0xff]
      %v325 = vld [vmem:[#allocation2 + $0x78] sm:$0xff]
      %v326 = vld [vmem:[%s259] sm:$0xf]
      %v327 = vld [vmem:[%s259 + $0x4] sm:$0xf]
      %v328 = vld [vmem:[%s259 + $0x8] sm:$0xf]
      %v329 = vld [vmem:[%s259 + $0xc] sm:$0xf]
      %v330 = vld [vmem:[%s259 + $0x10] sm:$0xf]
      %v331 = vld [vmem:[%s259 + $0x14] sm:$0xf]
      %v332 = vld [vmem:[%s259 + $0x18] sm:$0xf]
      %v333 = vld [vmem:[%s259 + $0x1c] sm:$0xf]
      %v334 = vld [vmem:[%s259 + $0x20] sm:$0xf]
      %v335 = vld [vmem:[%s259 + $0x24] sm:$0xf]
      %v336 = vld [vmem:[%s259 + $0x28] sm:$0xf]
      %v337 = vld [vmem:[%s259 + $0x2c] sm:$0xf]
      %v338 = vld [vmem:[%s259 + $0x30] sm:$0xf]
      %v339 = vld [vmem:[%s259 + $0x34] sm:$0xf]
      %v340 = vld [vmem:[%s259 + $0x38] sm:$0xf]
      %v341 = vld [vmem:[%s259 + $0x3c] sm:$0xf]
      %v342 = vld [vmem:[%s272] sm:$0xf]
      %v343 = vld [vmem:[%s272 + $0x4] sm:$0xf]
      %v344 = vld [vmem:[%s272 + $0x8] sm:$0xf]
      %v345 = vld [vmem:[%s272 + $0xc] sm:$0xf]
      %v346 = vld [vmem:[%s272 + $0x10] sm:$0xf]
      %v347 = vld [vmem:[%s272 + $0x14] sm:$0xf]
      %v348 = vld [vmem:[%s272 + $0x18] sm:$0xf]
      %v349 = vld [vmem:[%s272 + $0x1c] sm:$0xf]
      %v350 = vld [vmem:[%s272 + $0x20] sm:$0xf]
      %v351 = vld [vmem:[%s272 + $0x24] sm:$0xf]
      %v352 = vld [vmem:[%s272 + $0x28] sm:$0xf]
      %v353 = vld [vmem:[%s272 + $0x2c] sm:$0xf]
      %v354 = vld [vmem:[%s272 + $0x30] sm:$0xf]
      %v355 = vld [vmem:[%s272 + $0x34] sm:$0xf]
      %v356 = vld [vmem:[%s272 + $0x38] sm:$0xf]
      %v357 = vld [vmem:[%s272 + $0x3c] sm:$0xf]
      %v374 = vunpack.c.l.b16 %v326
      %v375 = vunpack.c.l.b16 %v327
      %v376 = vunpack.c.l.b16 %v328
      %v377 = vunpack.c.l.b16 %v329
      %v378 = vunpack.c.l.b16 %v330
      %v379 = vunpack.c.l.b16 %v331
      %v380 = vunpack.c.l.b16 %v332
      %v381 = vunpack.c.l.b16 %v333
      %v382 = vunpack.c.l.b16 %v334
      %v383 = vunpack.c.l.b16 %v335
      %v384 = vunpack.c.l.b16 %v336
      %v385 = vunpack.c.l.b16 %v337
      %v386 = vunpack.c.l.b16 %v338
      %v387 = vunpack.c.l.b16 %v339
      %v388 = vunpack.c.l.b16 %v340
      %v389 = vunpack.c.l.b16 %v341
      %v390 = vpack.c.b16 %v375, %v374
      %v391 = vpack.c.b16 %v377, %v376
      %v392 = vpack.c.b16 %v379, %v378
      %v393 = vpack.c.b16 %v381, %v380
      %v394 = vpack.c.b16 %v383, %v382
      %v395 = vpack.c.b16 %v385, %v384
      %v396 = vpack.c.b16 %v387, %v386
      %v397 = vpack.c.b16 %v389, %v388
      %v422 = vunpack.c.l.b16 %v342
      %v423 = vunpack.c.l.b16 %v343
      %v424 = vunpack.c.l.b16 %v344
      %v425 = vunpack.c.l.b16 %v345
      %v426 = vunpack.c.l.b16 %v346
      %v427 = vunpack.c.l.b16 %v347
      %v428 = vunpack.c.l.b16 %v348
      %v429 = vunpack.c.l.b16 %v349
      %v430 = vunpack.c.l.b16 %v350
      %v431 = vunpack.c.l.b16 %v351
      %v432 = vunpack.c.l.b16 %v352
      %v433 = vunpack.c.l.b16 %v353
      %v434 = vunpack.c.l.b16 %v354
      %v435 = vunpack.c.l.b16 %v355
      %v436 = vunpack.c.l.b16 %v356
      %v437 = vunpack.c.l.b16 %v357
      %v438 = vpack.c.b16 %v423, %v422
      %v439 = vpack.c.b16 %v425, %v424
      %v440 = vpack.c.b16 %v427, %v426
      %v441 = vpack.c.b16 %v429, %v428
      %v442 = vpack.c.b16 %v431, %v430
      %v443 = vpack.c.b16 %v433, %v432
      %v444 = vpack.c.b16 %v435, %v434
      %v445 = vpack.c.b16 %v437, %v436
      %454 = vmatpush.bf16.msra.mxu0 %v445
      %455 = vmatpush.bf16.msra.mxu0 %v444
      %456 = vmatpush.bf16.msra.mxu0 %v443
      %457 = vmatpush.bf16.msra.mxu0 %v442
      %458 = vmatpush.bf16.msra.mxu0 %v441
      %459 = vmatpush.bf16.msra.mxu0 %v440
      %460 = vmatpush.bf16.msra.mxu0 %v439
      %461 = vmatpush.bf16.msra.mxu0 %v438
      %462 = vmatmul.bf16.gmra.mxu0 %v390
      %v463 = vpop.f32.mrf.mxu0
      %v464 = vadd.f32 0.0, %v463
      %v465 = vpop.f32.mrf.mxu0
      %v466 = vadd.f32 0.0, %v465
      %467 = vmatmul.bf16.gmra.mxu0 %v391
      %v468 = vpop.f32.mrf.mxu0
      %v469 = vadd.f32 0.0, %v468
      %v470 = vpop.f32.mrf.mxu0
      %v471 = vadd.f32 0.0, %v470
      %472 = vmatmul.bf16.gmra.mxu0 %v392
      %v473 = vpop.f32.mrf.mxu0
      %v474 = vadd.f32 0.0, %v473
      %v475 = vpop.f32.mrf.mxu0
      %v476 = vadd.f32 0.0, %v475
      %477 = vmatmul.bf16.gmra.mxu0 %v393
      %v478 = vpop.f32.mrf.mxu0
      %v479 = vadd.f32 0.0, %v478
      %v480 = vpop.f32.mrf.mxu0
      %v481 = vadd.f32 0.0, %v480
      %482 = vmatmul.bf16.gmra.mxu0 %v394
      %v483 = vpop.f32.mrf.mxu0
      %v484 = vadd.f32 0.0, %v483
      %v485 = vpop.f32.mrf.mxu0
      %v486 = vadd.f32 0.0, %v485
      %487 = vmatmul.bf16.gmra.mxu0 %v395
      %v488 = vpop.f32.mrf.mxu0
      %v489 = vadd.f32 0.0, %v488
      %v490 = vpop.f32.mrf.mxu0
      %v491 = vadd.f32 0.0, %v490
      %492 = vmatmul.bf16.gmra.mxu0 %v396
      %v493 = vpop.f32.mrf.mxu0
      %v494 = vadd.f32 0.0, %v493
      %v495 = vpop.f32.mrf.mxu0
      %v496 = vadd.f32 0.0, %v495
      %497 = vmatmul.bf16.gmra.mxu0 %v397
      %v498 = vpop.f32.mrf.mxu0
      %v499 = vadd.f32 0.0, %v498
      %v500 = vpop.f32.mrf.mxu0
      %v501 = vadd.f32 0.0, %v500
      %502 = vdwg.mxu0
      %v503 = vadd.f32 %v310, %v464
      %v504 = vadd.f32 %v311, %v466
      %v505 = vadd.f32 %v312, %v469
      %v506 = vadd.f32 %v313, %v471
      %v507 = vadd.f32 %v314, %v474
      %v508 = vadd.f32 %v315, %v476
      %v509 = vadd.f32 %v316, %v479
      %v510 = vadd.f32 %v317, %v481
      %v511 = vadd.f32 %v318, %v484
      %v512 = vadd.f32 %v319, %v486
      %v513 = vadd.f32 %v320, %v489
      %v514 = vadd.f32 %v321, %v491
      %v515 = vadd.f32 %v322, %v494
      %v516 = vadd.f32 %v323, %v496
      %v517 = vadd.f32 %v324, %v499
      %v518 = vadd.f32 %v325, %v501
      %519 = vst [vmem:[#allocation2] sm:$0xff] %v503
      %520 = vst [vmem:[#allocation2 + $0x8] sm:$0xff] %v504
      %521 = vst [vmem:[#allocation2 + $0x10] sm:$0xff] %v505
      %522 = vst [vmem:[#allocation2 + $0x18] sm:$0xff] %v506
      %523 = vst [vmem:[#allocation2 + $0x20] sm:$0xff] %v507
      %524 = vst [vmem:[#allocation2 + $0x28] sm:$0xff] %v508
      %525 = vst [vmem:[#allocation2 + $0x30] sm:$0xff] %v509
      %526 = vst [vmem:[#allocation2 + $0x38] sm:$0xff] %v510
      %527 = vst [vmem:[#allocation2 + $0x40] sm:$0xff] %v511
      %528 = vst [vmem:[#allocation2 + $0x48] sm:$0xff] %v512
      %529 = vst [vmem:[#allocation2 + $0x50] sm:$0xff] %v513
      %530 = vst [vmem:[#allocation2 + $0x58] sm:$0xff] %v514
      %531 = vst [vmem:[#allocation2 + $0x60] sm:$0xff] %v515
      %532 = vst [vmem:[#allocation2 + $0x68] sm:$0xff] %v516
      %533 = vst [vmem:[#allocation2 + $0x70] sm:$0xff] %v517
      %534 = vst [vmem:[#allocation2 + $0x78] sm:$0xff] %v518
      // Predicated region
      $region37: #{forward.3} parent=31 // pred_check
        %p535 = pneg %p290
      $region38: #{forward.3} parent=31 // pred_check_branch
        %537 = sbr.rel (%p535) target = $region40
      $region39: #{forward.3} parent=31 // pred_region
        %v538 = vld [vmem:[#allocation2] sm:$0xff]
        %v539 = vld [vmem:[#allocation2 + $0x8] sm:$0xff]
        %v540 = vld [vmem:[#allocation2 + $0x10] sm:$0xff]
        %v541 = vld [vmem:[#allocation2 + $0x18] sm:$0xff]
        %v542 = vld [vmem:[#allocation2 + $0x20] sm:$0xff]
        %v543 = vld [vmem:[#allocation2 + $0x28] sm:$0xff]
        %v544 = vld [vmem:[#allocation2 + $0x30] sm:$0xff]
        %v545 = vld [vmem:[#allocation2 + $0x38] sm:$0xff]
        %v546 = vld [vmem:[#allocation2 + $0x40] sm:$0xff]
        %v547 = vld [vmem:[#allocation2 + $0x48] sm:$0xff]
        %v548 = vld [vmem:[#allocation2 + $0x50] sm:$0xff]
        %v549 = vld [vmem:[#allocation2 + $0x58] sm:$0xff]
        %v550 = vld [vmem:[#allocation2 + $0x60] sm:$0xff]
        %v551 = vld [vmem:[#allocation2 + $0x68] sm:$0xff]
        %v552 = vld [vmem:[#allocation2 + $0x70] sm:$0xff]
        %v553 = vld [vmem:[#allocation2 + $0x78] sm:$0xff]
        %v554 = vld [vmem:[%s276] sm:$0x1]
        %v556 = vperm.slane %v554, 0
        %v558 = vadd.f32 %v538, %v556
        %v559 = vadd.f32 %v539, %v556
        %v560 = vadd.f32 %v540, %v556
        %v561 = vadd.f32 %v541, %v556
        %v562 = vadd.f32 %v542, %v556
        %v563 = vadd.f32 %v543, %v556
        %v564 = vadd.f32 %v544, %v556
        %v565 = vadd.f32 %v545, %v556
        %v566 = vadd.f32 %v546, %v556
        %v567 = vadd.f32 %v547, %v556
        %v568 = vadd.f32 %v548, %v556
        %v569 = vadd.f32 %v549, %v556
        %v570 = vadd.f32 %v550, %v556
        %v571 = vadd.f32 %v551, %v556
        %v572 = vadd.f32 %v552, %v556
        %v573 = vadd.f32 %v553, %v556
        %574 = vst [vmem:[%s288] sm:$0xff] %v558
        %575 = vst [vmem:[%s288 + $0x8] sm:$0xff] %v559
        %576 = vst [vmem:[%s288 + $0x10] sm:$0xff] %v560
        %577 = vst [vmem:[%s288 + $0x18] sm:$0xff] %v561
        %578 = vst [vmem:[%s288 + $0x20] sm:$0xff] %v562
        %579 = vst [vmem:[%s288 + $0x28] sm:$0xff] %v563
        %580 = vst [vmem:[%s288 + $0x30] sm:$0xff] %v564
        %581 = vst [vmem:[%s288 + $0x38] sm:$0xff] %v565
        %582 = vst [vmem:[%s288 + $0x40] sm:$0xff] %v566
        %583 = vst [vmem:[%s288 + $0x48] sm:$0xff] %v567
        %584 = vst [vmem:[%s288 + $0x50] sm:$0xff] %v568
        %585 = vst [vmem:[%s288 + $0x58] sm:$0xff] %v569
        %586 = vst [vmem:[%s288 + $0x60] sm:$0xff] %v570
        %587 = vst [vmem:[%s288 + $0x68] sm:$0xff] %v571
        %588 = vst [vmem:[%s288 + $0x70] sm:$0xff] %v572
        %589 = vst [vmem:[%s288 + $0x78] sm:$0xff] %v573
      $region40: #{forward.3} parent=31 // pred_fallthru
        _
      %s590 = smul.u32 16, %s21
      %p591 = scmp.lt.s32.totalorder %s20, 1
      %s592 = scalar_select %p591, %s20, 1
      %p593 = scmp.lt.s32.totalorder %s590, 15
      %s594 = scalar_select %p593, %s590, 15
      %p595 = scmp.lt.s32.totalorder %s22, 0
      %s596 = scalar_select %p595, %s22, 0
      %s597 = sadd.s32 %s596, %s594
      %s598 = smul.addr %s592, 16
      %s599 = sadd.s32 %s597, %s598
      %s600 = smul.addr %s599, 8
      %s601 = scalar_lea.vmem %s3, %s600
      // Predicated region
      $region41: #{forward.3} parent=31 // pred_check
        %p602 = pneg %p146
      $region42: #{forward.3} parent=31 // pred_check_branch
        %604 = sbr.rel (%p602) target = $region44
      $region43: #{forward.3} parent=31 // pred_region
        %s605 = smul.u32 16, %s21
      $region44: #{forward.3} parent=31 // pred_fallthru
        _
    $region32: #{forward.3} parent=5 // pred_fallthru
      _
    %p606 = scmp.le.s32.totalorder 2, %s9
    // Predicated region
    $region45: #{forward.3} parent=5 // pred_check
      %p607 = pneg %p606
    $region46: #{forward.3} parent=5 // pred_check_branch
      %609 = sbr.rel (%p607) target = $region48
    $region47: #{forward.3} parent=5 // pred_region
      %s610 = ssub.s32 %s9, 2
      // Predicated region
      $region49: #{forward.3} parent=47 // pred_check
        %p611 = pneg %p152
      $region50: #{forward.3} parent=47 // pred_check_branch
        %613 = sbr.rel (%p611) target = $region52
      $region51: #{forward.3} parent=47 // pred_region
        %s614 = smul.u32 16, %s25
        %p615 = scmp.lt.s32.totalorder %s24, 1
        %s616 = scalar_select %p615, %s24, 1
        %p617 = scmp.lt.s32.totalorder %s614, 15
        %s618 = scalar_select %p617, %s614, 15
        %p619 = scmp.lt.s32.totalorder %s26, 0
        %s620 = scalar_select %p619, %s26, 0
        %s621 = sadd.s32 %s620, %s618
        %s622 = smul.addr %s616, 16
        %s623 = sadd.s32 %s621, %s622
        %s624 = smul.addr %s623, 8
        %s625 = scalar_lea.vmem %s3, %s624
      $region52: #{forward.3} parent=47 // pred_fallthru
        _
    $region48: #{forward.3} parent=5 // pred_fallthru
      _
  $region6: #{forward.3} parent=0 // loop_footer
    %s13 = sadd.s32 1, %s9
  $region7: #{forward.3} parent=0 // loop_footer_branch
    %8 = sbr.rel target = $region3
  $region8: #{forward.3} parent=0 // loop_exit
    _

// kernel: forward.2
$region0: #{forward.2}
  #allocation0 [shape = 'u32[]', space=smem, size = 0x4, offset = 0x4, fixed_abs, tag = 'smem constant byte address 0x4 - core index']
  #allocation1 [shape = 'u32[72,128]{1,0:T(1,128)}', space=vmem, size = 0x9000, scoped, tag = 'internal scratch']
  #allocation2 [shape = 'f32[128,128]{1,0:T(8,128)}', space=vmem, size = 0x10000, scoped, tag = 'scratch operand']
  %s0 = inlined_call_operand.vmem [shape: bf16[2,128,128], index: 0, kind: input, shape index: {}]
  %s1 = inlined_call_operand.vmem [shape: bf16[128,128], index: 1, kind: input, shape index: {}]
  %s2 = inlined_call_operand.vmem [shape: bf16[2,128,128], index: 2, kind: output, shape index: {}]
  %s3 = sld [smem:[#allocation0]]
  $region49: #{forward.2} parent=0
    _
  %s5 = ssub.s32 1, %s3
  %s6 = scalar_select 0, %s5, %s3
  loop: start=0, step=1, limit=4
  $region2: #{forward.2} parent=0 // loop_pre_header
    _
  $region3: #{forward.2} parent=0 // loop_header
    %s8 = sphi 0, %s12
    %p9 = scmp.ge.s32.totalorder %s8, 4
    %s15 = sphi 0, %s41
    %s16 = sphi 0, %s37
    %s17 = sphi 0, %s33
    %s18 = sphi 0, %s29
    %s19 = sphi 0, %s15
    %s20 = sphi 0, %s16
    %s21 = sphi 0, %s17
    %s22 = sphi 0, %s18
    %s23 = sphi 0, %s19
    %s24 = sphi 0, %s20
    %s25 = sphi 0, %s21
    %s26 = sphi 0, %s22
    %s48 = sphi 0, %s50
    %s51 = sphi 0, %s48
    %s52 = sphi 0, %s51
    %s68 = sphi 0, %s52
    %s76 = sphi 0, %s78
    %s79 = sphi 0, %s76
    %s80 = sphi 0, %s79
    %s96 = sphi 0, %s80
    %s106 = sphi 0, %s108
    %s109 = sphi 0, %s106
    %s110 = sphi 0, %s109
    %s126 = sphi 0, %s110
  $region4: #{forward.2} parent=0 // loop_header_branch
    %11 = sbr.rel (%p9) target = $region8
  $region5: #{forward.2} parent=0 // loop_body
    %s13 = ssub.s32 %s8, 1
    %s14 = ssub.s32 %s8, 2
    %s27 = sadd.s32 1, %s18
    %p28 = scmp.ge.s32.totalorder %s27, 1
    %s29 = scalar_select %p28, 0, %s27
    %s30 = sadd.s32 1, %s17
    %s31 = scalar_select %p28, %s30, %s17
    %p32 = scmp.ge.s32.totalorder %s31, 1
    %s33 = scalar_select %p32, 0, %s31
    %s34 = sadd.s32 1, %s16
    %s35 = scalar_select %p32, %s34, %s16
    %p36 = scmp.ge.s32.totalorder %s35, 1
    %s37 = scalar_select %p36, 0, %s35
    %s38 = sadd.s32 1, %s15
    %s39 = scalar_select %p36, %s38, %s15
    %p40 = scmp.ge.s32.totalorder %s39, 2
    %s41 = scalar_select %p40, 0, %s39
    %s42 = ssub.s32 %s15, %s41
    %s43 = ssub.s32 %s16, %s37
    %s44 = sor.u32 %s42, %s43
    %s45 = ssub.s32 %s18, %s29
    %s46 = sor.u32 %s44, %s45
    %p47 = scmp.eq.s32.totalorder %s46, 0
    %s49 = sadd.s32 %s48, 1
    %s50 = scalar_select %p47, %s48, %s49
    %p53 = pneg %p47
    %p54 = scmp.eq.s32.totalorder %s8, 1
    %p55 = por %p53, %p54
    %p56 = scmp.ne.s32.totalorder %s48, %s51
    %p57 = scmp.eq.s32.totalorder %s8, 0
    %p58 = por %p56, %p57
    %p59 = scmp.ne.s32.totalorder %s48, %s51
    %p60 = scmp.eq.s32.totalorder %s13, 1
    %p61 = por %p59, %p60
    %p62 = scmp.ne.s32.totalorder %s51, %s52
    %p63 = scmp.eq.s32.totalorder %s13, 0
    %p64 = por %p62, %p63
    %p65 = scmp.ne.s32.totalorder %s51, %s52
    %p66 = scmp.eq.s32.totalorder %s14, 1
    %p67 = por %p65, %p66
    %p69 = scmp.ne.s32.totalorder %s52, %s68
    %p70 = scmp.eq.s32.totalorder %s14, 0
    %p71 = por %p69, %p70
    %s72 = ssub.s32 %s18, %s29
    %s73 = ssub.s32 %s17, %s33
    %s74 = sor.u32 %s72, %s73
    %p75 = scmp.eq.s32.totalorder %s74, 0
    %s77 = sadd.s32 %s76, 1
    %s78 = scalar_select %p75, %s76, %s77
    %p81 = pneg %p75
    %p82 = scmp.eq.s32.totalorder %s8, 1
    %p83 = por %p81, %p82
    %p84 = scmp.ne.s32.totalorder %s76, %s79
    %p85 = scmp.eq.s32.totalorder %s8, 0
    %p86 = por %p84, %p85
    %p87 = scmp.ne.s32.totalorder %s76, %s79
    %p88 = scmp.eq.s32.totalorder %s13, 1
    %p89 = por %p87, %p88
    %p90 = scmp.ne.s32.totalorder %s79, %s80
    %p91 = scmp.eq.s32.totalorder %s13, 0
    %p92 = por %p90, %p91
    %p93 = scmp.ne.s32.totalorder %s79, %s80
    %p94 = scmp.eq.s32.totalorder %s14, 1
    %p95 = por %p93, %p94
    %p97 = scmp.ne.s32.totalorder %s80, %s96
    %p98 = scmp.eq.s32.totalorder %s14, 0
    %p99 = por %p97, %p98
    %s100 = ssub.s32 %s15, %s41
    %s101 = ssub.s32 %s16, %s37
    %s102 = sor.u32 %s100, %s101
    %s103 = ssub.s32 %s17, %s33
    %s104 = sor.u32 %s102, %s103
    %p105 = scmp.eq.s32.totalorder %s104, 0
    %s107 = sadd.s32 %s106, 1
    %s108 = scalar_select %p105, %s106, %s107
    %p111 = pneg %p105
    %p112 = scmp.eq.s32.totalorder %s8, 1
    %p113 = por %p111, %p112
    %p114 = scmp.ne.s32.totalorder %s106, %s109
    %p115 = scmp.eq.s32.totalorder %s8, 0
    %p116 = por %p114, %p115
    %p117 = scmp.ne.s32.totalorder %s106, %s109
    %p118 = scmp.eq.s32.totalorder %s13, 1
    %p119 = por %p117, %p118
    %p120 = scmp.ne.s32.totalorder %s109, %s110
    %p121 = scmp.eq.s32.totalorder %s13, 0
    %p122 = por %p120, %p121
    %p123 = scmp.ne.s32.totalorder %s109, %s110
    %p124 = scmp.eq.s32.totalorder %s14, 1
    %p125 = por %p123, %p124
    %p127 = scmp.ne.s32.totalorder %s110, %s126
    %p128 = scmp.eq.s32.totalorder %s14, 0
    %p129 = por %p127, %p128
    %p130 = scmp.le.s32.totalorder 1, %s8
    %p131 = scmp.lt.s32.totalorder %s8, 3
    %p132 = pnand %p130, %p131
    %p133 = pneg %p132
    // Predicated region
    $region9: #{forward.2} parent=5 // pred_check
      _
    $region10: #{forward.2} parent=5 // pred_check_branch
      %135 = sbr.rel (%p132) target = $region12
    $region11: #{forward.2} parent=5 // pred_region
      %s136 = ssub.s32 %s8, 1
      // Predicated region
      $region13: #{forward.2} parent=11 // pred_check
        %p137 = pneg %p92
      $region14: #{forward.2} parent=11 // pred_check_branch
        %139 = sbr.rel (%p137) target = $region16
      $region15: #{forward.2} parent=11 // pred_region
        %s140 = smul.u32 16, %s22
        %p141 = scmp.lt.s32.totalorder %s140, 15
        %s142 = scalar_select %p141, %s140, 15
        %p143 = scmp.lt.s32.totalorder %s21, 0
        %s144 = scalar_select %p143, %s21, 0
        %s145 = sadd.s32 %s144, %s142
        %s146 = smul.addr %s145, 4
        %s147 = scalar_lea.vmem %s1, %s146
        %s148 = smul.u32 16, %s22
      $region16: #{forward.2} parent=11 // pred_fallthru
        _
    $region12: #{forward.2} parent=5 // pred_fallthru
      _
    %p149 = scmp.lt.s32.totalorder %s8, 2
    // Predicated region
    $region17: #{forward.2} parent=5 // pred_check
      %p150 = pneg %p149
    $region18: #{forward.2} parent=5 // pred_check_branch
      %152 = sbr.rel (%p150) target = $region20
    $region19: #{forward.2} parent=5 // pred_region
      // Predicated region
      $region21: #{forward.2} parent=19 // pred_check
        %p153 = pneg %p58
      $region22: #{forward.2} parent=19 // pred_check_branch
        %155 = sbr.rel (%p153) target = $region24
      $region23: #{forward.2} parent=19 // pred_region
        %s156 = smul.u32 16, %s16
        %p157 = scmp.lt.s32.totalorder %s15, 1
        %s158 = scalar_select %p157, %s15, 1
        %p159 = scmp.lt.s32.totalorder %s156, 15
        %s160 = scalar_select %p159, %s156, 15
        %p161 = scmp.lt.s32.totalorder %s18, 0
        %s162 = scalar_select %p161, %s18, 0
        %s163 = sadd.s32 %s162, %s160
        %s164 = smul.addr %s158, 16
        %s165 = sadd.s32 %s163, %s164
        %s166 = smul.addr %s165, 4
        %s167 = scalar_lea.vmem %s0, %s166
        %s168 = smul.u32 16, %s16
      $region24: #{forward.2} parent=19 // pred_fallthru
        _
    $region20: #{forward.2} parent=5 // pred_fallthru
      _
    %p169 = scmp.le.s32.totalorder 1, %s8
    %p170 = scmp.lt.s32.totalorder %s8, 3
    %p171 = pnand %p169, %p170
    %p172 = pneg %p171
    // Predicated region
    $region25: #{forward.2} parent=5 // pred_check
      _
    $region26: #{forward.2} parent=5 // pred_check_branch
      %174 = sbr.rel (%p171) target = $region28
    $region27: #{forward.2} parent=5 // pred_region
      %s175 = ssub.s32 %s8, 1
      %s176 = smul.u32 16, %s20
      %p177 = scmp.lt.s32.totalorder %s19, 1
      %s178 = scalar_select %p177, %s19, 1
      %p179 = scmp.lt.s32.totalorder %s176, 15
      %s180 = scalar_select %p179, %s176, 15
      %p181 = scmp.lt.s32.totalorder %s22, 0
      %s182 = scalar_select %p181, %s22, 0
      %s183 = sadd.s32 %s182, %s180
      %s184 = smul.addr %s178, 16
      %s185 = sadd.s32 %s183, %s184
      %s186 = smul.addr %s185, 4
      %s187 = scalar_lea.vmem %s0, %s186
      %p188 = pneg %p64
      %p189 = pneg %p61
      %s190 = smul.u32 16, %s22
      %p191 = scmp.lt.s32.totalorder %s190, 15
      %s192 = scalar_select %p191, %s190, 15
      %p193 = scmp.lt.s32.totalorder %s21, 0
      %s194 = scalar_select %p193, %s21, 0
      %s195 = sadd.s32 %s194, %s192
      %s196 = smul.addr %s195, 4
      %s197 = scalar_lea.vmem %s1, %s196
      %p198 = pneg %p92
      %p199 = pneg %p89
      %p200 = pneg %p122
      %p201 = pneg %p119
      %s202 = smul.u32 16, %s20
      %p203 = scmp.lt.s32.totalorder %s19, 1
      %s204 = scalar_select %p203, %s19, 1
      %p205 = scmp.lt.s32.totalorder %s202, 15
      %s206 = scalar_select %p205, %s202, 15
      %p207 = scmp.lt.s32.totalorder %s21, 0
      %s208 = scalar_select %p207, %s21, 0
      %s209 = sadd.s32 %s208, %s206
      %s210 = smul.addr %s204, 16
      %s211 = sadd.s32 %s209, %s210
      %s212 = smul.addr %s211, 4
      %s213 = scalar_lea.vmem %s2, %s212
      %s214 = smul.u32 16, %s20
      %p215 = scmp.lt.s32.totalorder %s19, 1
      %s216 = scalar_select %p215, %s19, 1
      %p217 = scmp.lt.s32.totalorder %s214, 15
      %s218 = scalar_select %p217, %s214, 15
      %p219 = scmp.lt.s32.totalorder %s22, 0
      %s220 = scalar_select %p219, %s22, 0
      %s221 = sadd.s32 %s220, %s218
      %s222 = smul.addr %s216, 16
      %s223 = sadd.s32 %s221, %s222
      %s224 = smul.addr %s223, 4
      %s225 = scalar_lea.vmem %s0, %s224
      %s226 = smul.u32 16, %s20
      %s227 = smul.u32 16, %s22
      %p228 = scmp.lt.s32.totalorder %s227, 15
      %s229 = scalar_select %p228, %s227, 15
      %p230 = scmp.lt.s32.totalorder %s21, 0
      %s231 = scalar_select %p230, %s21, 0
      %s232 = sadd.s32 %s231, %s229
      %s233 = smul.addr %s232, 4
      %s234 = scalar_lea.vmem %s1, %s233
      %s235 = smul.u32 16, %s22
      %s236 = smul.u32 16, %s20
      %p237 = scmp.lt.s32.totalorder %s19, 1
      %s238 = scalar_select %p237, %s19, 1
      %p239 = scmp.lt.s32.totalorder %s236, 15
      %s240 = scalar_select %p239, %s236, 15
      %p241 = scmp.lt.s32.totalorder %s21, 0
      %s242 = scalar_select %p241, %s21, 0
      %s243 = sadd.s32 %s242, %s240
      %s244 = smul.addr %s238, 16
      %s245 = sadd.s32 %s243, %s244
      %s246 = smul.addr %s245, 4
      %s247 = scalar_lea.vmem %s2, %s246
      %s248 = smul.u32 16, %s20
      %p249 = scmp.eq.s32.totalorder %s22, 0
      // Predicated region
      $region29: #{forward.2} parent=27 // pred_check
        %p250 = pneg %p249
      $region30: #{forward.2} parent=27 // pred_check_branch
        %252 = sbr.rel (%p250) target = $region32
      $region31: #{forward.2} parent=27 // pred_region
        %253 = vst [vmem:[#allocation2] sm:$0xff] 0.0
        %254 = vst [vmem:[#allocation2 + $0x8] sm:$0xff] 0.0
        %255 = vst [vmem:[#allocation2 + $0x10] sm:$0xff] 0.0
        %256 = vst [vmem:[#allocation2 + $0x18] sm:$0xff] 0.0
        %257 = vst [vmem:[#allocation2 + $0x20] sm:$0xff] 0.0
        %258 = vst [vmem:[#allocation2 + $0x28] sm:$0xff] 0.0
        %259 = vst [vmem:[#allocation2 + $0x30] sm:$0xff] 0.0
        %260 = vst [vmem:[#allocation2 + $0x38] sm:$0xff] 0.0
        %261 = vst [vmem:[#allocation2 + $0x40] sm:$0xff] 0.0
        %262 = vst [vmem:[#allocation2 + $0x48] sm:$0xff] 0.0
        %263 = vst [vmem:[#allocation2 + $0x50] sm:$0xff] 0.0
        %264 = vst [vmem:[#allocation2 + $0x58] sm:$0xff] 0.0
        %265 = vst [vmem:[#allocation2 + $0x60] sm:$0xff] 0.0
        %266 = vst [vmem:[#allocation2 + $0x68] sm:$0xff] 0.0
        %267 = vst [vmem:[#allocation2 + $0x70] sm:$0xff] 0.0
        %268 = vst [vmem:[#allocation2 + $0x78] sm:$0xff] 0.0
      $region32: #{forward.2} parent=27 // pred_fallthru
        _
      %v269 = vld [vmem:[#allocation2] sm:$0xff]
      %v270 = vld [vmem:[#allocation2 + $0x8] sm:$0xff]
      %v271 = vld [vmem:[#allocation2 + $0x10] sm:$0xff]
      %v272 = vld [vmem:[#allocation2 + $0x18] sm:$0xff]
      %v273 = vld [vmem:[#allocation2 + $0x20] sm:$0xff]
      %v274 = vld [vmem:[#allocation2 + $0x28] sm:$0xff]
      %v275 = vld [vmem:[#allocation2 + $0x30] sm:$0xff]
      %v276 = vld [vmem:[#allocation2 + $0x38] sm:$0xff]
      %v277 = vld [vmem:[#allocation2 + $0x40] sm:$0xff]
      %v278 = vld [vmem:[#allocation2 + $0x48] sm:$0xff]
      %v279 = vld [vmem:[#allocation2 + $0x50] sm:$0xff]
      %v280 = vld [vmem:[#allocation2 + $0x58] sm:$0xff]
      %v281 = vld [vmem:[#allocation2 + $0x60] sm:$0xff]
      %v282 = vld [vmem:[#allocation2 + $0x68] sm:$0xff]
      %v283 = vld [vmem:[#allocation2 + $0x70] sm:$0xff]
      %v284 = vld [vmem:[#allocation2 + $0x78] sm:$0xff]
      %v285 = vld [vmem:[%s225] sm:$0xf]
      %v286 = vld [vmem:[%s225 + $0x4] sm:$0xf]
      %v287 = vld [vmem:[%s225 + $0x8] sm:$0xf]
      %v288 = vld [vmem:[%s225 + $0xc] sm:$0xf]
      %v289 = vld [vmem:[%s225 + $0x10] sm:$0xf]
      %v290 = vld [vmem:[%s225 + $0x14] sm:$0xf]
      %v291 = vld [vmem:[%s225 + $0x18] sm:$0xf]
      %v292 = vld [vmem:[%s225 + $0x1c] sm:$0xf]
      %v293 = vld [vmem:[%s225 + $0x20] sm:$0xf]
      %v294 = vld [vmem:[%s225 + $0x24] sm:$0xf]
      %v295 = vld [vmem:[%s225 + $0x28] sm:$0xf]
      %v296 = vld [vmem:[%s225 + $0x2c] sm:$0xf]
      %v297 = vld [vmem:[%s225 + $0x30] sm:$0xf]
      %v298 = vld [vmem:[%s225 + $0x34] sm:$0xf]
      %v299 = vld [vmem:[%s225 + $0x38] sm:$0xf]
      %v300 = vld [vmem:[%s225 + $0x3c] sm:$0xf]
      %v301 = vld [vmem:[%s234] sm:$0xf]
      %v302 = vld [vmem:[%s234 + $0x4] sm:$0xf]
      %v303 = vld [vmem:[%s234 + $0x8] sm:$0xf]
      %v304 = vld [vmem:[%s234 + $0xc] sm:$0xf]
      %v305 = vld [vmem:[%s234 + $0x10] sm:$0xf]
      %v306 = vld [vmem:[%s234 + $0x14] sm:$0xf]
      %v307 = vld [vmem:[%s234 + $0x18] sm:$0xf]
      %v308 = vld [vmem:[%s234 + $0x1c] sm:$0xf]
      %v309 = vld [vmem:[%s234 + $0x20] sm:$0xf]
      %v310 = vld [vmem:[%s234 + $0x24] sm:$0xf]
      %v311 = vld [vmem:[%s234 + $0x28] sm:$0xf]
      %v312 = vld [vmem:[%s234 + $0x2c] sm:$0xf]
      %v313 = vld [vmem:[%s234 + $0x30] sm:$0xf]
      %v314 = vld [vmem:[%s234 + $0x34] sm:$0xf]
      %v315 = vld [vmem:[%s234 + $0x38] sm:$0xf]
      %v316 = vld [vmem:[%s234 + $0x3c] sm:$0xf]
      %v333 = vunpack.c.l.b16 %v285
      %v334 = vunpack.c.l.b16 %v286
      %v335 = vunpack.c.l.b16 %v287
      %v336 = vunpack.c.l.b16 %v288
      %v337 = vunpack.c.l.b16 %v289
      %v338 = vunpack.c.l.b16 %v290
      %v339 = vunpack.c.l.b16 %v291
      %v340 = vunpack.c.l.b16 %v292
      %v341 = vunpack.c.l.b16 %v293
      %v342 = vunpack.c.l.b16 %v294
      %v343 = vunpack.c.l.b16 %v295
      %v344 = vunpack.c.l.b16 %v296
      %v345 = vunpack.c.l.b16 %v297
      %v346 = vunpack.c.l.b16 %v298
      %v347 = vunpack.c.l.b16 %v299
      %v348 = vunpack.c.l.b16 %v300
      %v349 = vpack.c.b16 %v334, %v333
      %v350 = vpack.c.b16 %v336, %v335
      %v351 = vpack.c.b16 %v338, %v337
      %v352 = vpack.c.b16 %v340, %v339
      %v353 = vpack.c.b16 %v342, %v341
      %v354 = vpack.c.b16 %v344, %v343
      %v355 = vpack.c.b16 %v346, %v345
      %v356 = vpack.c.b16 %v348, %v347
      %v381 = vunpack.c.l.b16 %v301
      %v382 = vunpack.c.l.b16 %v302
      %v383 = vunpack.c.l.b16 %v303
      %v384 = vunpack.c.l.b16 %v304
      %v385 = vunpack.c.l.b16 %v305
      %v386 = vunpack.c.l.b16 %v306
      %v387 = vunpack.c.l.b16 %v307
      %v388 = vunpack.c.l.b16 %v308
      %v389 = vunpack.c.l.b16 %v309
      %v390 = vunpack.c.l.b16 %v310
      %v391 = vunpack.c.l.b16 %v311
      %v392 = vunpack.c.l.b16 %v312
      %v393 = vunpack.c.l.b16 %v313
      %v394 = vunpack.c.l.b16 %v314
      %v395 = vunpack.c.l.b16 %v315
      %v396 = vunpack.c.l.b16 %v316
      %v397 = vpack.c.b16 %v382, %v381
      %v398 = vpack.c.b16 %v384, %v383
      %v399 = vpack.c.b16 %v386, %v385
      %v400 = vpack.c.b16 %v388, %v387
      %v401 = vpack.c.b16 %v390, %v389
      %v402 = vpack.c.b16 %v392, %v391
      %v403 = vpack.c.b16 %v394, %v393
      %v404 = vpack.c.b16 %v396, %v395
      %413 = vmatpush.bf16.msra.mxu0 %v404
      %414 = vmatpush.bf16.msra.mxu0 %v403
      %415 = vmatpush.bf16.msra.mxu0 %v402
      %416 = vmatpush.bf16.msra.mxu0 %v401
      %417 = vmatpush.bf16.msra.mxu0 %v400
      %418 = vmatpush.bf16.msra.mxu0 %v399
      %419 = vmatpush.bf16.msra.mxu0 %v398
      %420 = vmatpush.bf16.msra.mxu0 %v397
      %421 = vmatmul.bf16.gmra.mxu0 %v349
      %v422 = vpop.f32.mrf.mxu0
      %v423 = vadd.f32 0.0, %v422
      %v424 = vpop.f32.mrf.mxu0
      %v425 = vadd.f32 0.0, %v424
      %426 = vmatmul.bf16.gmra.mxu0 %v350
      %v427 = vpop.f32.mrf.mxu0
      %v428 = vadd.f32 0.0, %v427
      %v429 = vpop.f32.mrf.mxu0
      %v430 = vadd.f32 0.0, %v429
      %431 = vmatmul.bf16.gmra.mxu0 %v351
      %v432 = vpop.f32.mrf.mxu0
      %v433 = vadd.f32 0.0, %v432
      %v434 = vpop.f32.mrf.mxu0
      %v435 = vadd.f32 0.0, %v434
      %436 = vmatmul.bf16.gmra.mxu0 %v352
      %v437 = vpop.f32.mrf.mxu0
      %v438 = vadd.f32 0.0, %v437
      %v439 = vpop.f32.mrf.mxu0
      %v440 = vadd.f32 0.0, %v439
      %441 = vmatmul.bf16.gmra.mxu0 %v353
      %v442 = vpop.f32.mrf.mxu0
      %v443 = vadd.f32 0.0, %v442
      %v444 = vpop.f32.mrf.mxu0
      %v445 = vadd.f32 0.0, %v444
      %446 = vmatmul.bf16.gmra.mxu0 %v354
      %v447 = vpop.f32.mrf.mxu0
      %v448 = vadd.f32 0.0, %v447
      %v449 = vpop.f32.mrf.mxu0
      %v450 = vadd.f32 0.0, %v449
      %451 = vmatmul.bf16.gmra.mxu0 %v355
      %v452 = vpop.f32.mrf.mxu0
      %v453 = vadd.f32 0.0, %v452
      %v454 = vpop.f32.mrf.mxu0
      %v455 = vadd.f32 0.0, %v454
      %456 = vmatmul.bf16.gmra.mxu0 %v356
      %v457 = vpop.f32.mrf.mxu0
      %v458 = vadd.f32 0.0, %v457
      %v459 = vpop.f32.mrf.mxu0
      %v460 = vadd.f32 0.0, %v459
      %461 = vdwg.mxu0
      %v462 = vadd.f32 %v269, %v423
      %v463 = vadd.f32 %v270, %v425
      %v464 = vadd.f32 %v271, %v428
      %v465 = vadd.f32 %v272, %v430
      %v466 = vadd.f32 %v273, %v433
      %v467 = vadd.f32 %v274, %v435
      %v468 = vadd.f32 %v275, %v438
      %v469 = vadd.f32 %v276, %v440
      %v470 = vadd.f32 %v277, %v443
      %v471 = vadd.f32 %v278, %v445
      %v472 = vadd.f32 %v279, %v448
      %v473 = vadd.f32 %v280, %v450
      %v474 = vadd.f32 %v281, %v453
      %v475 = vadd.f32 %v282, %v455
      %v476 = vadd.f32 %v283, %v458
      %v477 = vadd.f32 %v284, %v460
      %478 = vst [vmem:[#allocation2] sm:$0xff] %v462
      %479 = vst [vmem:[#allocation2 + $0x8] sm:$0xff] %v463
      %480 = vst [vmem:[#allocation2 + $0x10] sm:$0xff] %v464
      %481 = vst [vmem:[#allocation2 + $0x18] sm:$0xff] %v465
      %482 = vst [vmem:[#allocation2 + $0x20] sm:$0xff] %v466
      %483 = vst [vmem:[#allocation2 + $0x28] sm:$0xff] %v467
      %484 = vst [vmem:[#allocation2 + $0x30] sm:$0xff] %v468
      %485 = vst [vmem:[#allocation2 + $0x38] sm:$0xff] %v469
      %486 = vst [vmem:[#allocation2 + $0x40] sm:$0xff] %v470
      %487 = vst [vmem:[#allocation2 + $0x48] sm:$0xff] %v471
      %488 = vst [vmem:[#allocation2 + $0x50] sm:$0xff] %v472
      %489 = vst [vmem:[#allocation2 + $0x58] sm:$0xff] %v473
      %490 = vst [vmem:[#allocation2 + $0x60] sm:$0xff] %v474
      %491 = vst [vmem:[#allocation2 + $0x68] sm:$0xff] %v475
      %492 = vst [vmem:[#allocation2 + $0x70] sm:$0xff] %v476
      %493 = vst [vmem:[#allocation2 + $0x78] sm:$0xff] %v477
      // Predicated region
      $region33: #{forward.2} parent=27 // pred_check
        %p494 = pneg %p249
      $region34: #{forward.2} parent=27 // pred_check_branch
        %496 = sbr.rel (%p494) target = $region36
      $region35: #{forward.2} parent=27 // pred_region
        %v497 = vld [vmem:[#allocation2] sm:$0xff]
        %v498 = vld [vmem:[#allocation2 + $0x8] sm:$0xff]
        %v499 = vld [vmem:[#allocation2 + $0x10] sm:$0xff]
        %v500 = vld [vmem:[#allocation2 + $0x18] sm:$0xff]
        %v501 = vld [vmem:[#allocation2 + $0x20] sm:$0xff]
        %v502 = vld [vmem:[#allocation2 + $0x28] sm:$0xff]
        %v503 = vld [vmem:[#allocation2 + $0x30] sm:$0xff]
        %v504 = vld [vmem:[#allocation2 + $0x38] sm:$0xff]
        %v505 = vld [vmem:[#allocation2 + $0x40] sm:$0xff]
        %v506 = vld [vmem:[#allocation2 + $0x48] sm:$0xff]
        %v507 = vld [vmem:[#allocation2 + $0x50] sm:$0xff]
        %v508 = vld [vmem:[#allocation2 + $0x58] sm:$0xff]
        %v509 = vld [vmem:[#allocation2 + $0x60] sm:$0xff]
        %v510 = vld [vmem:[#allocation2 + $0x68] sm:$0xff]
        %v511 = vld [vmem:[#allocation2 + $0x70] sm:$0xff]
        %v512 = vld [vmem:[#allocation2 + $0x78] sm:$0xff]
        %v513 = vpack.c.bf16 %v497, %v497
        %v514 = vpack.c.bf16 %v498, %v498
        %v515 = vpack.c.bf16 %v499, %v499
        %v516 = vpack.c.bf16 %v500, %v500
        %v517 = vpack.c.bf16 %v501, %v501
        %v518 = vpack.c.bf16 %v502, %v502
        %v519 = vpack.c.bf16 %v503, %v503
        %v520 = vpack.c.bf16 %v504, %v504
        %v521 = vpack.c.bf16 %v505, %v505
        %v522 = vpack.c.bf16 %v506, %v506
        %v523 = vpack.c.bf16 %v507, %v507
        %v524 = vpack.c.bf16 %v508, %v508
        %v525 = vpack.c.bf16 %v509, %v509
        %v526 = vpack.c.bf16 %v510, %v510
        %v527 = vpack.c.bf16 %v511, %v511
        %v528 = vpack.c.bf16 %v512, %v512
        %529 = vst [vmem:[%s247] sm:$0xf] %v513
        %530 = vst [vmem:[%s247 + $0x4] sm:$0xf] %v514
        %531 = vst [vmem:[%s247 + $0x8] sm:$0xf] %v515
        %532 = vst [vmem:[%s247 + $0xc] sm:$0xf] %v516
        %533 = vst [vmem:[%s247 + $0x10] sm:$0xf] %v517
        %534 = vst [vmem:[%s247 + $0x14] sm:$0xf] %v518
        %535 = vst [vmem:[%s247 + $0x18] sm:$0xf] %v519
        %536 = vst [vmem:[%s247 + $0x1c] sm:$0xf] %v520
        %537 = vst [vmem:[%s247 + $0x20] sm:$0xf] %v521
        %538 = vst [vmem:[%s247 + $0x24] sm:$0xf] %v522
        %539 = vst [vmem:[%s247 + $0x28] sm:$0xf] %v523
        %540 = vst [vmem:[%s247 + $0x2c] sm:$0xf] %v524
        %541 = vst [vmem:[%s247 + $0x30] sm:$0xf] %v525
        %542 = vst [vmem:[%s247 + $0x34] sm:$0xf] %v526
        %543 = vst [vmem:[%s247 + $0x38] sm:$0xf] %v527
        %544 = vst [vmem:[%s247 + $0x3c] sm:$0xf] %v528
      $region36: #{forward.2} parent=27 // pred_fallthru
        _
      %s545 = smul.u32 16, %s20
      %p546 = scmp.lt.s32.totalorder %s19, 1
      %s547 = scalar_select %p546, %s19, 1
      %p548 = scmp.lt.s32.totalorder %s545, 15
      %s549 = scalar_select %p548, %s545, 15
      %p550 = scmp.lt.s32.totalorder %s21, 0
      %s551 = scalar_select %p550, %s21, 0
      %s552 = sadd.s32 %s551, %s549
      %s553 = smul.addr %s547, 16
      %s554 = sadd.s32 %s552, %s553
      %s555 = smul.addr %s554, 4
      %s556 = scalar_lea.vmem %s2, %s555
      // Predicated region
      $region37: #{forward.2} parent=27 // pred_check
        %p557 = pneg %p119
      $region38: #{forward.2} parent=27 // pred_check_branch
        %559 = sbr.rel (%p557) target = $region40
      $region39: #{forward.2} parent=27 // pred_region
        %s560 = smul.u32 16, %s20
      $region40: #{forward.2} parent=27 // pred_fallthru
        _
    $region28: #{forward.2} parent=5 // pred_fallthru
      _
    %p561 = scmp.le.s32.totalorder 2, %s8
    // Predicated region
    $region41: #{forward.2} parent=5 // pred_check
      %p562 = pneg %p561
    $region42: #{forward.2} parent=5 // pred_check_branch
      %564 = sbr.rel (%p562) target = $region44
    $region43: #{forward.2} parent=5 // pred_region
      %s565 = ssub.s32 %s8, 2
      // Predicated region
      $region45: #{forward.2} parent=43 // pred_check
        %p566 = pneg %p125
      $region46: #{forward.2} parent=43 // pred_check_branch
        %568 = sbr.rel (%p566) target = $region48
      $region47: #{forward.2} parent=43 // pred_region
        %s569 = smul.u32 16, %s24
        %p570 = scmp.lt.s32.totalorder %s23, 1
        %s571 = scalar_select %p570, %s23, 1
        %p572 = scmp.lt.s32.totalorder %s569, 15
        %s573 = scalar_select %p572, %s569, 15
        %p574 = scmp.lt.s32.totalorder %s25, 0
        %s575 = scalar_select %p574, %s25, 0
        %s576 = sadd.s32 %s575, %s573
        %s577 = smul.addr %s571, 16
        %s578 = sadd.s32 %s576, %s577
        %s579 = smul.addr %s578, 4
        %s580 = scalar_lea.vmem %s2, %s579
      $region48: #{forward.2} parent=43 // pred_fallthru
        _
    $region44: #{forward.2} parent=5 // pred_fallthru
      _
  $region6: #{forward.2} parent=0 // loop_footer
    %s12 = sadd.s32 1, %s8
  $region7: #{forward.2} parent=0 // loop_footer_branch
    %7 = sbr.rel target = $region3
  $region8: #{forward.2} parent=0 // loop_exit
    _

</llo_original>
